<compile_context>
chip_gen: v6e
topology: v6e:2x2x1
jax: 0.10.0
libtpu: 0.0.40
codegen_flags: <defaults>
</compile_context>

<pallas_src>
import math

import numpy as np

import jax
import jax.numpy as jnp
from jax import lax
from jax.experimental import pallas as pl
from jax.experimental.pallas import tpu as pltpu


# ----------------------------------------------------------------------------
# Pallas kernel: one (channel-tile, box-group) grid step of grouped ROIAlign.
# ----------------------------------------------------------------------------
def _make_grouped_roi_kernel(TC, H8, W, G, Pp):
    GP = G * Pp

    def kernel(group_batch_ref, feat_ref, wxs_ref, wys_ref, out_ref):
        # group_batch_ref : SMEM int32 (n_groups,)  -- only used by index_maps
        # feat_ref        : VMEM (1, TC*H8, W)      -- channel tile of this group's image
        # wxs_ref         : VMEM bf16 (1, W, G*Pp)  -- stacked per-box column factors
        # wys_ref         : VMEM bf16 (1, G*Pp, H8) -- stacked per-box row factors
        # out_ref         : VMEM f32 (1, TC, Pp, G*Pp)  lane-dense output block
        del group_batch_ref

        f = feat_ref[0].astype(jnp.bfloat16)                      # (TC*H8, W)
        wxs = wxs_ref[0]                                          # (W, GP) bf16

        # ---- stage 1: ONE wide MXU matmul over the shared feature block ----
        t1 = jnp.dot(f, wxs, preferred_element_type=jnp.float32)  # (TC*H8, GP)
        # H8 % 8 == 0 -> this split is layout preserving (free).
        t1 = t1.reshape(TC, H8, GP).astype(jnp.bfloat16)          # (TC, H8, GP)

        # ---- stage 2: H contraction, batched over the channel tile ---------
        wys = jnp.broadcast_to(wys_ref[0][None], (TC, GP, H8))    # (TC, GP, H8)
        s2 = lax.dot_general(
            wys, t1,
            dimension_numbers=(((2,), (1,)), ((0,), (0,))),
            preferred_element_type=jnp.float32)                   # (TC, GP, GP)

        # Keep only the matching-box (diagonal) blocks, laid out lane-dense:
        # out[c, ph, j*Pp + pw] = s2[c, j*Pp + ph, j*Pp + pw]
        lane = lax.broadcasted_iota(jnp.int32, (1, 1, GP), 2)
        acc = jnp.zeros((TC, Pp, GP), jnp.float32)
        for j in range(G):
            sel = jnp.logical_and(lane >= j * Pp, lane < (j + 1) * Pp)
            blk = s2[:, j * Pp:(j + 1) * Pp, :]                   # sublane-aligned slice
            acc = acc + jnp.where(sel, blk, 0.0)
        out_ref[0] = acc

    return kernel


# ----------------------------------------------------------------------------
# Wrapper helpers
# ----------------------------------------------------------------------------
def _tpu_vmem_capacity_bytes():
    cap = 64 * 1024 * 1024  # conservative default (v7x per-TensorCore VMEM)
    try:
        info = pltpu.get_tpu_info()
        c = getattr(info, "vmem_capacity_bytes", None)
        if c:
            cap = int(c)
    except Exception:
        pass
    return min(cap, 128 * 1024 * 1024)


def _choose_channel_tile(C, H8, W, GP, Pp, itemsize, budget_bytes):
    """Largest channel tile whose per-step VMEM footprint fits the budget."""
    per_c = (2 * H8 * W * itemsize      # feature block (double buffered)
             + H8 * W * 2               # bf16 copy of the feature block
             + H8 * GP * 6              # t1 (f32) + bf16 copy
             + GP * H8 * 2              # broadcast Wy
             + GP * GP * 4              # cross-term intermediate
             + 3 * Pp * GP * 4)         # accumulator + double-buffered out block
    fixed = 4 * (W * GP + GP * H8)      # double-buffered bf16 factor blocks
    avail = max(budget_bytes - fixed, per_c)
    tc_max = max(1, min(C, avail // per_c))
    best_div = 1
    for d in range(1, int(tc_max) + 1):
        if C % d == 0:
            best_div = d
    if best_div == C or 2 * best_div >= tc_max:
        return best_div
    return int(tc_max)  # non-divisor: wrapper pads C (cdiv tiling)


def _separable_factor(lo, hi, extent, extent_pad, P, Pp, S, scale, aligned):
    """(Mp, Pp, extent_pad) separable bilinear ROIAlign factor (1/S folded in)."""
    offset = 0.5 if aligned else 0.0
    lo = lo * scale - offset
    hi = hi * scale - offset
    length = hi - lo
    if not aligned:  # legacy ROIAlign clamps the roi to at least 1x1
        length = jnp.maximum(length, 1.0)
    bin_sz = length / P                                       # (Mp,)

    p = jnp.arange(P, dtype=jnp.float32)                      # (P,)
    s = (jnp.arange(S, dtype=jnp.float32) + 0.5) / S          # (S,)
    pos = (lo[:, None, None]
           + p[None, :, None] * bin_sz[:, None, None]
           + s[None, None, :] * bin_sz[:, None, None])        # (Mp, P, S)

    valid = jnp.logical_and(pos >= -1.0, pos <= float(extent))
    pos0 = jnp.clip(pos, 0.0, extent - 1.0)
    idx_lo = jnp.floor(pos0)
    idx_hi = jnp.minimum(idx_lo + 1.0, extent - 1.0)
    frac = pos0 - idx_lo

    grid = jnp.arange(extent_pad, dtype=jnp.float32)          # (E8,)
    w = (jnp.where(grid == idx_lo[..., None], 1.0 - frac[..., None], 0.0)
         + jnp.where(grid == idx_hi[..., None], frac[..., None], 0.0))
    w = jnp.where(valid[..., None], w, 0.0).sum(axis=2) / S   # (Mp, P, E8)
    if Pp > P:
        w = jnp.pad(w, ((0, 0), (0, Pp - P), (0, 0)))
    return w


def roi_align_grouped(feat_nchw, box_lists, P, scale, sampling_ratio, aligned,
                      target_mxu_n=128):
    """ROIAlign of all boxes (all images) against one feature level.

    feat_nchw : (N, C, H, W) float32 (or bfloat16) feature map.
    box_lists : list of (K_i, 4) [x1, y1, x2, y2] arrays, one per image.
    Returns   : (M, C, P, P) float32, M = sum(K_i), boxes in input order.
    """
    N, C, H, W = (int(d) for d in feat_nchw.shape)
    counts = [int(b.shape[0]) for b in box_lists]
    M = sum(counts)
    if M == 0:
        return jnp.zeros((0, C, P, P), jnp.float32)

    S = int(sampling_ratio)
    assert S > 0  # TODO(synk): adaptive sampling_ratio=0 is not supported
    assert max(H, W, P) < 2 ** 24  # exact f32 integer matching in the factors

    # ---- static grouping of same-image boxes --------------------------------
    Pp = ((P + 7) // 8) * 8                      # pooled rows padded to sublanes
    G = max(1, min(target_mxu_n // Pp, max(counts)))
    GP = G * Pp
    groups_per_img = [(k + G - 1) // G for k in counts]
    n_groups = sum(groups_per_img)
    Mp = n_groups * G

    grp_off, acc = [], 0
    for gpi in groups_per_img:
        grp_off.append(acc)
        acc += gpi
    gather_idx = []
    for i in range(N):
        if counts[i]:
            gather_idx.extend(grp_off[i] * G + b for b in range(counts[i]))
    gather_idx = np.asarray(gather_idx, dtype=np.int32)
    group_batch = np.clip(
        np.repeat(np.arange(N, dtype=np.int32),
                  np.asarray(groups_per_img, dtype=np.int32)), 0, N - 1)

    padded = []
    for i in range(N):
        if groups_per_img[i] == 0:
            continue
        b = jnp.asarray(box_lists[i], jnp.float32).reshape(counts[i], 4)
        pad = groups_per_img[i] * G - counts[i]
        padded.append(jnp.pad(b, ((0, pad), (0, 0))))
    boxes_p = jnp.concatenate(padded, axis=0)                  # (Mp, 4)

    # ---- per-box separable factors (precomputed, bf16) ----------------------
    H8 = ((H + 7) // 8) * 8
    scale = float(scale)
    wy = _separable_factor(boxes_p[:, 1], boxes_p[:, 3], H, H8, P, Pp, S,
                           scale, aligned)                     # (Mp, Pp, H8)
    wx = _separable_factor(boxes_p[:, 0], boxes_p[:, 2], W, W, P, Pp, S,
                           scale, aligned)                     # (Mp, Pp, W)
    wys = wy.reshape(n_groups, GP, H8).astype(jnp.bfloat16)
    wxs = (wx.reshape(n_groups, G, Pp, W)
             .transpose(0, 3, 1, 2)
             .reshape(n_groups, W, GP)
             .astype(jnp.bfloat16))

    # ---- channel tiling / VMEM budget (generation aware) --------------------
    itemsize = jnp.dtype(feat_nchw.dtype).itemsize
    vmem_limit = int(_tpu_vmem_capacity_bytes() * 3 // 4)
    TC = _choose_channel_tile(C, H8, W, GP, Pp, itemsize,
                              budget_bytes=int(vmem_limit * 0.7))
    C_pad = ((C + TC - 1) // TC) * TC
    n_c = C_pad // TC

    feat = feat_nchw
    if C_pad != C or H8 != H:
        feat = jnp.pad(feat, ((0, 0), (0, C_pad - C), (0, H8 - H), (0, 0)))
    feat2d = feat.reshape(N, C_pad * H8, W)   # free metadata reshape: (TC*H8, W) LHS

    # ---- pallas call ---------------------------------------------------------
    kernel = _make_grouped_roi_kernel(TC, H8, W, G, Pp)

    flops = 2 * n_c * n_groups * (TC * H8 * W * GP + TC * GP * H8 * GP)
    bytes_accessed = (N * C_pad * H8 * W * itemsize          # unique feature loads
                      + n_groups * (W * GP + GP * H8) * 2    # factor blocks
                      + n_groups * C_pad * Pp * GP * 4)      # outputs

    out = pl.pallas_call(
        kernel,
        out_shape=jax.ShapeDtypeStruct((n_groups, C_pad, Pp, GP), jnp.float32),
        grid_spec=pltpu.PrefetchScalarGridSpec(
            num_scalar_prefetch=1,              # group -> image index
            grid=(n_c, n_groups),               # groups innermost: same-image
                                                # groups reuse the feature block
            in_specs=[
                pl.BlockSpec((1, TC * H8, W), lambda ct, g, gb: (gb[g], ct, 0)),
                pl.BlockSpec((1, W, GP), lambda ct, g, gb: (g, 0, 0)),
                pl.BlockSpec((1, GP, H8), lambda ct, g, gb: (g, 0, 0)),
            ],
            out_specs=pl.BlockSpec((1, TC, Pp, GP),
                                   lambda ct, g, gb: (g, ct, 0, 0)),
        ),
        compiler_params=pltpu.CompilerParams(
            dimension_semantics=("parallel", "arbitrary"),
            vmem_limit_bytes=vmem_limit),
        cost_estimate=pl.CostEstimate(flops=flops, transcendentals=0,
                                      bytes_accessed=bytes_accessed),
    )(jnp.asarray(group_batch, dtype=jnp.int32), feat2d, wxs, wys)

    # ---- wrapper-side layout plumbing back to (M, C, P, P) -------------------
    out = out.reshape(n_groups, C_pad, Pp, G, Pp)
    out = out.transpose(0, 3, 1, 2, 4).reshape(Mp, C_pad, Pp, Pp)
    out = out[:, :C, :P, :P]
    out = out[jnp.asarray(gather_idx)]
    return out


class MultiROIPooler:
    """JAX/Pallas port of the PyTorch MultiROIPooler forward pass."""

    def __init__(self, output_size, scales, sampling_ratio, pooler_type,
                 canonical_box_size=224, canonical_level=4):
        if isinstance(output_size, int):
            output_size = (output_size, output_size)
        assert len(output_size) > 0
        self.output_size = tuple(int(s) for s in output_size)
        self.scales = tuple(float(s) for s in scales)
        assert int(sampling_ratio) > 0  # TODO(synk): sampling_ratio=0 unsupported
        self.sampling_ratio = int(sampling_ratio)

        if pooler_type == "ROIAlign":
            self.aligned = False
        elif pooler_type == "ROIAlignV2":
            self.aligned = True
        else:
            # TODO(synk): ROIPool (hard max pooling) has no separable/matmul form here.
            raise ValueError("Unknown pooler type: {}".format(pooler_type))

        min_level = -math.log2(scales[0])
        max_level = -math.log2(scales[-1])
        assert math.isclose(min_level, int(min_level))
        assert math.isclose(max_level, int(max_level))
        self.min_level = int(min_level)
        self.max_level = int(max_level)
        assert 0 < self.min_level and self.min_level <= self.max_level
        assert self.min_level <= canonical_level <= self.max_level
        self.canonical_level = canonical_level
        assert canonical_box_size > 0
        self.canonical_box_size = canonical_box_size

    def __call__(self, x, box_lists):
        """
        x         : list of (N, C, H_l, W_l) feature maps, one per level.
        box_lists : list of (K_i, 4) boxes, one per image in the batch.
        Returns a list of (M, C, P_l, P_l) arrays (every level pools ALL boxes,
        matching the reference module).
        """
        outputs = []
        for x_level, out_size, scale in zip(x, self.output_size, self.scales):
            outputs.append(
                roi_align_grouped(
                    x_level, box_lists,
                    P=out_size, scale=scale,
                    sampling_ratio=self.sampling_ratio, aligned=self.aligned,
                )
            )
        return outputs


if __name__ == "__main__":
    key = jax.random.PRNGKey(0)
    k_f0, k_f1, k_b0, k_b1 = jax.random.split(key, 4)

    # Small synthetic setup: image size 64, 2 images, 4 channels, 2 FPN levels.
    N, C = 2, 4
    x = [
        jax.random.normal(k_f0, (N, C, 16, 16), dtype=jnp.float32),  # stride 4
        jax.random.normal(k_f1, (N, C, 8, 8), dtype=jnp.float32),    # stride 8
    ]

    def make_boxes(k, n):
        ka, kb = jax.random.split(k)
        xy1 = jax.random.uniform(ka, (n, 2), minval=0.0, maxval=32.0)
        wh = jax.random.uniform(kb, (n, 2), minval=8.0, maxval=30.0)
        return jnp.concatenate([xy1, xy1 + wh], axis=-1)  # [x1, y1, x2, y2]

    box_lists = [make_boxes(k_b0, 3), make_boxes(k_b1, 2)]  # M = 5 total boxes

    pooler = MultiROIPooler(
        output_size=[8, 4],
        scales=[1.0 / 4, 1.0 / 8],
        sampling_ratio=2,
        pooler_type="ROIAlignV2",
        canonical_box_size=224,
        canonical_level=3,
    )

    outs = pooler(x, box_lists)
    for o in outs:
        jax.block_until_ready(o)

    assert outs[0].shape == (5, C, 8, 8), outs[0].shape
    assert outs[1].shape == (5, C, 4, 4), outs[1].shape
    assert all(bool(jnp.isfinite(o).all()) for o in outs)

    # Sanity check: pooling constant features over in-bounds boxes must give
    # (approximately) that constant, since the bilinear weights sum to 1 per bin
    # (bf16 factors/features give ~1e-2 deviations at most).
    x_const = [jnp.ones((N, C, 16, 16), jnp.float32),
               jnp.ones((N, C, 8, 8), jnp.float32)]
    outs_const = pooler(x_const, box_lists)
    for o in outs_const:
        jax.block_until_ready(o)
        assert bool(jnp.max(jnp.abs(o - 1.0)) < 0.05), float(jnp.max(jnp.abs(o - 1.0)))

    print("KERNEL_OK")
</pallas_src>

<mosaic_0001>
module attributes {stable_mosaic.version = 11 : i64} {
  func.func @kernel(%arg0: i32, %arg1: i32, %arg2: memref<2xi32, #tpu.memory_space<smem>>, %arg3: memref<1x64x16xf32, #tpu.memory_space<vmem>>, %arg4: memref<1x16x24xbf16, #tpu.memory_space<vmem>>, %arg5: memref<1x24x16xbf16, #tpu.memory_space<vmem>>, %arg6: memref<1x4x8x24xf32, #tpu.memory_space<vmem>>) attributes {dimension_semantics = [#tpu.dimension_semantics<parallel>, #tpu.dimension_semantics<arbitrary>], iteration_bounds = array<i64: 1, 2>, scalar_prefetch = 1 : i64, scratch_operands = 0 : i64, tpu.core_type = #tpu.core_type<tc>, window_params = [{transform_indices = @transform_0, window_bounds = array<i64: 1, 64, 16>}, {transform_indices = @transform_1, window_bounds = array<i64: 1, 16, 24>}, {transform_indices = @transform_2, window_bounds = array<i64: 1, 24, 16>}, {transform_indices = @transform_3, window_bounds = array<i64: 1, 4, 8, 24>}]} {
    %c0 = arith.constant 0 : index
    %c0_0 = arith.constant 0 : index
    %c0_1 = arith.constant 0 : index
    %0 = vector.load %arg3[%c0, %c0_0, %c0_1] : memref<1x64x16xf32, #tpu.memory_space<vmem>>, vector<1x64x16xf32>
    %1 = vector.shape_cast %0 : vector<1x64x16xf32> to vector<64x16xf32>
    %2 = arith.truncf %1 : vector<64x16xf32> to vector<64x16xbf16>
    %c0_2 = arith.constant 0 : index
    %c0_3 = arith.constant 0 : index
    %c0_4 = arith.constant 0 : index
    %3 = vector.load %arg4[%c0_2, %c0_3, %c0_4] : memref<1x16x24xbf16, #tpu.memory_space<vmem>>, vector<1x16x24xbf16>
    %4 = vector.shape_cast %3 : vector<1x16x24xbf16> to vector<16x24xbf16>
    %cst = arith.constant dense<0.000000e+00> : vector<64x24xf32>
    %5 = tpu.matmul %2, %4, %cst {dimension_numbers = #tpu.dot_dimension_numbers<[1], [0], [0], [1], [0, 0, 1, 1], [], []>} : vector<64x16xbf16>, vector<16x24xbf16>, vector<64x24xf32> -> vector<64x24xf32>
    %6 = vector.shape_cast %5 : vector<64x24xf32> to vector<4x16x24xf32>
    %7 = arith.truncf %6 : vector<4x16x24xf32> to vector<4x16x24xbf16>
    %c0_5 = arith.constant 0 : index
    %c0_6 = arith.constant 0 : index
    %c0_7 = arith.constant 0 : index
    %8 = vector.load %arg5[%c0_5, %c0_6, %c0_7] : memref<1x24x16xbf16, #tpu.memory_space<vmem>>, vector<1x24x16xbf16>
    %9 = vector.shape_cast %8 : vector<1x24x16xbf16> to vector<24x16xbf16>
    %10 = vector.shape_cast %9 : vector<24x16xbf16> to vector<1x24x16xbf16>
    %11 = vector.shape_cast %10 : vector<1x24x16xbf16> to vector<1x24x16xbf16>
    %12 = vector.broadcast %11 : vector<1x24x16xbf16> to vector<4x24x16xbf16>
    %cst_8 = arith.constant dense<0.000000e+00> : vector<4x24x24xf32>
    %13 = tpu.matmul %12, %7, %cst_8 {dimension_numbers = #tpu.dot_dimension_numbers<[2], [1], [1], [2], [0, 0, 0, 1, 1, 2], [0], [0]>} : vector<4x24x16xbf16>, vector<4x16x24xbf16>, vector<4x24x24xf32> -> vector<4x24x24xf32>
    %14 = tpu.iota {dimensions = array<i32: 2>} : vector<1x1x24xi32>
    %cst_9 = arith.constant 0.000000e+00 : f32
    %15 = vector.broadcast %cst_9 : f32 to vector<4x8x24xf32>
    %c0_i32 = arith.constant 0 : i32
    %16 = vector.broadcast %c0_i32 : i32 to vector<1x1x24xi32>
    %17 = arith.cmpi sge, %14, %16 : vector<1x1x24xi32>
    %c8_i32 = arith.constant 8 : i32
    %18 = vector.broadcast %c8_i32 : i32 to vector<1x1x24xi32>
    %19 = arith.cmpi slt, %14, %18 : vector<1x1x24xi32>
    %20 = arith.andi %17, %19 : vector<1x1x24xi1>
    %21 = vector.extract_strided_slice %13 {offsets = [0, 0, 0], sizes = [4, 8, 24], strides = [1, 1, 1]} : vector<4x24x24xf32> to vector<4x8x24xf32>
    %cst_10 = arith.constant 0.000000e+00 : f32
    %22 = vector.shape_cast %20 : vector<1x1x24xi1> to vector<1x1x24xi1>
    %23 = vector.broadcast %22 : vector<1x1x24xi1> to vector<4x8x24xi1>
    %24 = vector.broadcast %cst_10 : f32 to vector<4x8x24xf32>
    %25 = arith.select %23, %21, %24 : vector<4x8x24xi1>, vector<4x8x24xf32>
    %26 = arith.addf %15, %25 : vector<4x8x24xf32>
    %c8_i32_11 = arith.constant 8 : i32
    %27 = vector.broadcast %c8_i32_11 : i32 to vector<1x1x24xi32>
    %28 = arith.cmpi sge, %14, %27 : vector<1x1x24xi32>
    %c16_i32 = arith.constant 16 : i32
    %29 = vector.broadcast %c16_i32 : i32 to vector<1x1x24xi32>
    %30 = arith.cmpi slt, %14, %29 : vector<1x1x24xi32>
    %31 = arith.andi %28, %30 : vector<1x1x24xi1>
    %32 = vector.extract_strided_slice %13 {offsets = [0, 8, 0], sizes = [4, 8, 24], strides = [1, 1, 1]} : vector<4x24x24xf32> to vector<4x8x24xf32>
    %cst_12 = arith.constant 0.000000e+00 : f32
    %33 = vector.shape_cast %31 : vector<1x1x24xi1> to vector<1x1x24xi1>
    %34 = vector.broadcast %33 : vector<1x1x24xi1> to vector<4x8x24xi1>
    %35 = vector.broadcast %cst_12 : f32 to vector<4x8x24xf32>
    %36 = arith.select %34, %32, %35 : vector<4x8x24xi1>, vector<4x8x24xf32>
    %37 = arith.addf %26, %36 : vector<4x8x24xf32>
    %c16_i32_13 = arith.constant 16 : i32
    %38 = vector.broadcast %c16_i32_13 : i32 to vector<1x1x24xi32>
    %39 = arith.cmpi sge, %14, %38 : vector<1x1x24xi32>
    %c24_i32 = arith.constant 24 : i32
    %40 = vector.broadcast %c24_i32 : i32 to vector<1x1x24xi32>
    %41 = arith.cmpi slt, %14, %40 : vector<1x1x24xi32>
    %42 = arith.andi %39, %41 : vector<1x1x24xi1>
    %43 = vector.extract_strided_slice %13 {offsets = [0, 16, 0], sizes = [4, 8, 24], strides = [1, 1, 1]} : vector<4x24x24xf32> to vector<4x8x24xf32>
    %cst_14 = arith.constant 0.000000e+00 : f32
    %44 = vector.shape_cast %42 : vector<1x1x24xi1> to vector<1x1x24xi1>
    %45 = vector.broadcast %44 : vector<1x1x24xi1> to vector<4x8x24xi1>
    %46 = vector.broadcast %cst_14 : f32 to vector<4x8x24xf32>
    %47 = arith.select %45, %43, %46 : vector<4x8x24xi1>, vector<4x8x24xf32>
    %48 = arith.addf %37, %47 : vector<4x8x24xf32>
    %c0_15 = arith.constant 0 : index
    %c0_16 = arith.constant 0 : index
    %c0_17 = arith.constant 0 : index
    %c0_18 = arith.constant 0 : index
    %49 = vector.load %arg6[%c0_15, %c0_16, %c0_17, %c0_18] : memref<1x4x8x24xf32, #tpu.memory_space<vmem>>, vector<1x4x8x24xf32>
    %50 = vector.shape_cast %49 : vector<1x4x8x24xf32> to vector<4x8x24xf32>
    %51 = vector.shape_cast %48 : vector<4x8x24xf32> to vector<1x4x8x24xf32>
    tpu.vector_store %arg6[%c0_15, %c0_16, %c0_17, %c0_18], %51 {strides = array<i32>} : memref<1x4x8x24xf32, #tpu.memory_space<vmem>>, vector<1x4x8x24xf32>,
    return
  }
  func.func @transform_0(%arg0: i32, %arg1: i32, %arg2: memref<2xi32, #tpu.memory_space<smem>>) -> (i32, i32, i32) {
    %0 = arith.index_cast %arg1 : i32 to index
    %1 = memref.load %arg2[%0] : memref<2xi32, #tpu.memory_space<smem>>
    %c0_i32 = arith.constant 0 : i32
    %c0_i32_0 = arith.constant 0 : i32
    return %1, %arg0, %c0_i32 : i32, i32, i32
  }
  func.func @transform_1(%arg0: i32, %arg1: i32, %arg2: memref<2xi32, #tpu.memory_space<smem>>) -> (i32, i32, i32) {
    %c0_i32 = arith.constant 0 : i32
    %c0_i32_0 = arith.constant 0 : i32
    %c0_i32_1 = arith.constant 0 : i32
    return %arg1, %c0_i32, %c0_i32_0 : i32, i32, i32
  }
  func.func @transform_2(%arg0: i32, %arg1: i32, %arg2: memref<2xi32, #tpu.memory_space<smem>>) -> (i32, i32, i32) {
    %c0_i32 = arith.constant 0 : i32
    %c0_i32_0 = arith.constant 0 : i32
    %c0_i32_1 = arith.constant 0 : i32
    return %arg1, %c0_i32, %c0_i32_0 : i32, i32, i32
  }
  func.func @transform_3(%arg0: i32, %arg1: i32, %arg2: memref<2xi32, #tpu.memory_space<smem>>) -> (i32, i32, i32, i32) {
    %c0_i32 = arith.constant 0 : i32
    %c0_i32_0 = arith.constant 0 : i32
    %c0_i32_1 = arith.constant 0 : i32
    return %arg1, %arg0, %c0_i32, %c0_i32_0 : i32, i32, i32, i32
  }
}

</mosaic_0001>

<llo_original>
// kernel: tpu_custom_call.1
$region0: #{tpu_custom_call.1}
  #allocation0 [shape = 'u32[]', space=smem, size = 0x4, offset = 0x4, fixed_abs, tag = 'smem constant byte address 0x4 - core index']
  #allocation1 [shape = 'u32[144,128]{1,0:T(1,128)}', space=vmem, size = 0x12000, scoped, tag = 'internal scratch']
  #allocation2 [shape = 's32[1]{0}', space=sflag, size = 0x4, scoped, tag = 'scoped memory for tpu_custom_call.1']
  #allocation3 [shape = 'u8[512]{0}', space=smem, size = 0x200, scoped, tag = 'prefetched SMEM operand 0']
  %s0 = inlined_call_operand.vmem [shape: s32[2], index: 0, kind: input, shape index: {}]
  %s1 = inlined_call_operand.vmem [shape: f32[2,64,16], index: 1, kind: input, shape index: {}]
  %s2 = inlined_call_operand.vmem [shape: bf16[2,16,24], index: 2, kind: input, shape index: {}]
  %s3 = inlined_call_operand.vmem [shape: bf16[2,24,16], index: 3, kind: input, shape index: {}]
  %s4 = inlined_call_operand.hbm [shape: f32[2,4,8,24], index: 4, kind: output, shape index: {}]
  %s5 = sld [smem:[#allocation0]]
  $region45: #{tpu_custom_call.1} parent=0
    _
  %s7 = ssub.s32 1, %s5
  %s8 = scalar_select 0, %s7, %s5
  %s9 = sshll.u32 %s0, 4
  %s10 = int_to_ptr.vmem [resolvable:$true] %s9
  %12 = dma.vmem_to_smem %s10, 16, [#allocation3], [#allocation2]
  %13 = dma.done [#allocation2], 16
  %14 = sfence
  $region1: #{tpu_custom_call.1} parent=0
    #allocation4 [shape = 'u8[32768]{0}', space=vmem, size = 0x8000, scoped, tag = 'output window, operand 0']
    #allocation5 [shape = 's32[2]{0}', space=sflag, size = 0x8, scoped, tag = 'scoped memory for tpu_custom_call.1']
    %15 = vsyncpa [#allocation5], 0
    %s16 = scalar_lea.sflag [#allocation5], 1
    %17 = vsyncpa %s16, 0
    loop: start=0, step=1, limit=4
    $region2: #{tpu_custom_call.1} parent=1 // loop_pre_header
      _
    $region3: #{tpu_custom_call.1} parent=1 // loop_header
      %s19 = sphi 0, %s23
      %p20 = scmp.ge.s32.totalorder %s19, 4
      %s26 = sphi 0, %s38
      %s27 = sphi 0, %s34
      %s28 = sphi 0, %s26
      %s29 = sphi 0, %s27
      %s30 = sphi 0, %s28
      %s31 = sphi 0, %s29
      %s45 = sphi 0, %s47
      %s48 = sphi 0, %s45
      %s49 = sphi 0, %s48
      %s65 = sphi 0, %s49
      %s71 = sphi 0, %s73
      %s74 = sphi 0, %s71
      %s75 = sphi 0, %s74
      %s91 = sphi 0, %s75
      %s97 = sphi 0, %s99
      %s100 = sphi 0, %s97
      %s101 = sphi 0, %s100
      %s117 = sphi 0, %s101
      %s125 = sphi 0, %s127
      %s128 = sphi 0, %s125
      %s129 = sphi 0, %s128
      %s145 = sphi 0, %s129
    $region4: #{tpu_custom_call.1} parent=1 // loop_header_branch
      %22 = sbr.rel (%p20) target = $region8
    $region5: #{tpu_custom_call.1} parent=1 // loop_body
      %s24 = ssub.s32 %s19, 1
      %s25 = ssub.s32 %s19, 2
      %s32 = sadd.s32 1, %s27
      %p33 = scmp.ge.s32.totalorder %s32, 2
      %s34 = scalar_select %p33, 0, %s32
      %s35 = sadd.s32 1, %s26
      %s36 = scalar_select %p33, %s35, %s26
      %p37 = scmp.ge.s32.totalorder %s36, 1
      %s38 = scalar_select %p37, 0, %s36
      %s39 = sld [smem:[#allocation3 + %s27]]
      %s40 = sld [smem:[#allocation3 + %s34]]
      %s41 = ssub.s32 %s39, %s40
      %s42 = ssub.s32 %s26, %s38
      %s43 = sor.u32 %s41, %s42
      %p44 = scmp.eq.s32.totalorder %s43, 0
      %s46 = sadd.s32 %s45, 1
      %s47 = scalar_select %p44, %s45, %s46
      %p50 = pneg %p44
      %p51 = scmp.eq.s32.totalorder %s19, 1
      %p52 = por %p50, %p51
      %p53 = scmp.ne.s32.totalorder %s45, %s48
      %p54 = scmp.eq.s32.totalorder %s19, 0
      %p55 = por %p53, %p54
      %p56 = scmp.ne.s32.totalorder %s45, %s48
      %p57 = scmp.eq.s32.totalorder %s24, 1
      %p58 = por %p56, %p57
      %p59 = scmp.ne.s32.totalorder %s48, %s49
      %p60 = scmp.eq.s32.totalorder %s24, 0
      %p61 = por %p59, %p60
      %p62 = scmp.ne.s32.totalorder %s48, %s49
      %p63 = scmp.eq.s32.totalorder %s25, 1
      %p64 = por %p62, %p63
      %p66 = scmp.ne.s32.totalorder %s49, %s65
      %p67 = scmp.eq.s32.totalorder %s25, 0
      %p68 = por %p66, %p67
      %s69 = ssub.s32 %s27, %s34
      %p70 = scmp.eq.s32.totalorder %s69, 0
      %s72 = sadd.s32 %s71, 1
      %s73 = scalar_select %p70, %s71, %s72
      %p76 = pneg %p70
      %p77 = scmp.eq.s32.totalorder %s19, 1
      %p78 = por %p76, %p77
      %p79 = scmp.ne.s32.totalorder %s71, %s74
      %p80 = scmp.eq.s32.totalorder %s19, 0
      %p81 = por %p79, %p80
      %p82 = scmp.ne.s32.totalorder %s71, %s74
      %p83 = scmp.eq.s32.totalorder %s24, 1
      %p84 = por %p82, %p83
      %p85 = scmp.ne.s32.totalorder %s74, %s75
      %p86 = scmp.eq.s32.totalorder %s24, 0
      %p87 = por %p85, %p86
      %p88 = scmp.ne.s32.totalorder %s74, %s75
      %p89 = scmp.eq.s32.totalorder %s25, 1
      %p90 = por %p88, %p89
      %p92 = scmp.ne.s32.totalorder %s75, %s91
      %p93 = scmp.eq.s32.totalorder %s25, 0
      %p94 = por %p92, %p93
      %s95 = ssub.s32 %s27, %s34
      %p96 = scmp.eq.s32.totalorder %s95, 0
      %s98 = sadd.s32 %s97, 1
      %s99 = scalar_select %p96, %s97, %s98
      %p102 = pneg %p96
      %p103 = scmp.eq.s32.totalorder %s19, 1
      %p104 = por %p102, %p103
      %p105 = scmp.ne.s32.totalorder %s97, %s100
      %p106 = scmp.eq.s32.totalorder %s19, 0
      %p107 = por %p105, %p106
      %p108 = scmp.ne.s32.totalorder %s97, %s100
      %p109 = scmp.eq.s32.totalorder %s24, 1
      %p110 = por %p108, %p109
      %p111 = scmp.ne.s32.totalorder %s100, %s101
      %p112 = scmp.eq.s32.totalorder %s24, 0
      %p113 = por %p111, %p112
      %p114 = scmp.ne.s32.totalorder %s100, %s101
      %p115 = scmp.eq.s32.totalorder %s25, 1
      %p116 = por %p114, %p115
      %p118 = scmp.ne.s32.totalorder %s101, %s117
      %p119 = scmp.eq.s32.totalorder %s25, 0
      %p120 = por %p118, %p119
      %s121 = ssub.s32 %s27, %s34
      %s122 = ssub.s32 %s26, %s38
      %s123 = sor.u32 %s121, %s122
      %p124 = scmp.eq.s32.totalorder %s123, 0
      %s126 = sadd.s32 %s125, 1
      %s127 = scalar_select %p124, %s125, %s126
      %p130 = pneg %p124
      %p131 = scmp.eq.s32.totalorder %s19, 1
      %p132 = por %p130, %p131
      %p133 = scmp.ne.s32.totalorder %s125, %s128
      %p134 = scmp.eq.s32.totalorder %s19, 0
      %p135 = por %p133, %p134
      %p136 = scmp.ne.s32.totalorder %s125, %s128
      %p137 = scmp.eq.s32.totalorder %s24, 1
      %p138 = por %p136, %p137
      %p139 = scmp.ne.s32.totalorder %s128, %s129
      %p140 = scmp.eq.s32.totalorder %s24, 0
      %p141 = por %p139, %p140
      %p142 = scmp.ne.s32.totalorder %s128, %s129
      %p143 = scmp.eq.s32.totalorder %s25, 1
      %p144 = por %p142, %p143
      %p146 = scmp.ne.s32.totalorder %s129, %s145
      %p147 = scmp.eq.s32.totalorder %s25, 0
      %p148 = por %p146, %p147
      %p149 = scmp.le.s32.totalorder 1, %s19
      %p150 = scmp.lt.s32.totalorder %s19, 3
      %p151 = pnand %p149, %p150
      %p152 = pneg %p151
      // Predicated region
      $region9: #{tpu_custom_call.1} parent=5 // pred_check
        _
      $region10: #{tpu_custom_call.1} parent=5 // pred_check_branch
        %154 = sbr.rel (%p151) target = $region12
      $region11: #{tpu_custom_call.1} parent=5 // pred_region
        %s155 = ssub.s32 %s19, 1
      $region12: #{tpu_custom_call.1} parent=5 // pred_fallthru
        _
      %p156 = scmp.lt.s32.totalorder %s19, 2
      // Predicated region
      $region13: #{tpu_custom_call.1} parent=5 // pred_check
        %p157 = pneg %p156
      $region14: #{tpu_custom_call.1} parent=5 // pred_check_branch
        %159 = sbr.rel (%p157) target = $region16
      $region15: #{tpu_custom_call.1} parent=5 // pred_region
        // Predicated region
        $region17: #{tpu_custom_call.1} parent=15 // pred_check
          %p160 = pneg %p55
        $region18: #{tpu_custom_call.1} parent=15 // pred_check_branch
          %162 = sbr.rel (%p160) target = $region20
        $region19: #{tpu_custom_call.1} parent=15 // pred_region
          %s163 = sld [smem:[#allocation3 + %s27]]
          %s164 = smul.u32 8, %s26
          %p165 = scmp.lt.s32.totalorder %s163, 1
          %s166 = scalar_select %p165, %s163, 1
          %p167 = scmp.lt.s32.totalorder %s164, 7
          %s168 = scalar_select %p167, %s164, 7
          %s169 = smul.addr %s166, 8
          %s170 = sadd.s32 %s168, %s169
          %s171 = smul.addr %s170, 8
          %s172 = scalar_lea.vmem %s1, %s171
          %s173 = sld [smem:[#allocation3 + %s27]]
          %s174 = smul.u32 8, %s26
        $region20: #{tpu_custom_call.1} parent=15 // pred_fallthru
          _
        // Predicated region
        $region21: #{tpu_custom_call.1} parent=15 // pred_check
          %p175 = pneg %p81
        $region22: #{tpu_custom_call.1} parent=15 // pred_check_branch
          %177 = sbr.rel (%p175) target = $region24
        $region23: #{tpu_custom_call.1} parent=15 // pred_region
          %p178 = scmp.lt.s32.totalorder %s27, 1
          %s179 = scalar_select %p178, %s27, 1
          %s180 = smul.addr %s179, 2
          %s181 = smul.addr %s180, 4
          %s182 = scalar_lea.vmem %s2, %s181
        $region24: #{tpu_custom_call.1} parent=15 // pred_fallthru
          _
        // Predicated region
        $region25: #{tpu_custom_call.1} parent=15 // pred_check
          %p183 = pneg %p107
        $region26: #{tpu_custom_call.1} parent=15 // pred_check_branch
          %185 = sbr.rel (%p183) target = $region28
        $region27: #{tpu_custom_call.1} parent=15 // pred_region
          %p186 = scmp.lt.s32.totalorder %s27, 1
          %s187 = scalar_select %p186, %s27, 1
          %s188 = smul.addr %s187, 3
          %s189 = smul.addr %s188, 4
          %s190 = scalar_lea.vmem %s3, %s189
        $region28: #{tpu_custom_call.1} parent=15 // pred_fallthru
          _
      $region16: #{tpu_custom_call.1} parent=5 // pred_fallthru
        _
      %p191 = scmp.le.s32.totalorder 1, %s19
      %p192 = scmp.lt.s32.totalorder %s19, 3
      %p193 = pnand %p191, %p192
      %p194 = pneg %p193
      // Predicated region
      $region29: #{tpu_custom_call.1} parent=5 // pred_check
        _
      $region30: #{tpu_custom_call.1} parent=5 // pred_check_branch
        %196 = sbr.rel (%p193) target = $region32
      $region31: #{tpu_custom_call.1} parent=5 // pred_region
        %s197 = ssub.s32 %s19, 1
        %s198 = sld [smem:[#allocation3 + %s29]]
        %s199 = smul.u32 8, %s28
        %p200 = scmp.lt.s32.totalorder %s198, 1
        %s201 = scalar_select %p200, %s198, 1
        %p202 = scmp.lt.s32.totalorder %s199, 7
        %s203 = scalar_select %p202, %s199, 7
        %s204 = smul.addr %s201, 8
        %s205 = sadd.s32 %s203, %s204
        %s206 = smul.addr %s205, 8
        %s207 = scalar_lea.vmem %s1, %s206
        %p208 = pneg %p61
        %p209 = pneg %p58
        %p210 = scmp.lt.s32.totalorder %s29, 1
        %s211 = scalar_select %p210, %s29, 1
        %s212 = smul.addr %s211, 2
        %s213 = smul.addr %s212, 4
        %s214 = scalar_lea.vmem %s2, %s213
        %p215 = pneg %p87
        %p216 = pneg %p84
        %p217 = scmp.lt.s32.totalorder %s29, 1
        %s218 = scalar_select %p217, %s29, 1
        %s219 = smul.addr %s218, 3
        %s220 = smul.addr %s219, 4
        %s221 = scalar_lea.vmem %s3, %s220
        %p222 = pneg %p113
        %p223 = pneg %p110
        %p224 = pneg %p141
        %p225 = pneg %p138
        %s226 = sand.u32 %s128, 1
        %s227 = scalar_lea.sflag [#allocation5], %s226
        %s228 = sand.u32 %s128, 1
        %s229 = smul.addr %s228, 32
        %s230 = scalar_lea.vmem [#allocation4], %s229
        %s231 = sld [smem:[#allocation3 + %s29]]
        %s232 = smul.u32 8, %s28
        %p233 = scmp.lt.s32.totalorder %s231, 1
        %s234 = scalar_select %p233, %s231, 1
        %p235 = scmp.lt.s32.totalorder %s232, 7
        %s236 = scalar_select %p235, %s232, 7
        %s237 = smul.addr %s234, 8
        %s238 = sadd.s32 %s236, %s237
        %s239 = smul.addr %s238, 8
        %s240 = scalar_lea.vmem %s1, %s239
        %s241 = sld [smem:[#allocation3 + %s29]]
        %s242 = smul.u32 8, %s28
        %p243 = scmp.lt.s32.totalorder %s29, 1
        %s244 = scalar_select %p243, %s29, 1
        %s245 = smul.addr %s244, 2
        %s246 = smul.addr %s245, 4
        %s247 = scalar_lea.vmem %s2, %s246
        %p248 = scmp.lt.s32.totalorder %s29, 1
        %s249 = scalar_select %p248, %s29, 1
        %s250 = smul.addr %s249, 3
        %s251 = smul.addr %s250, 4
        %s252 = scalar_lea.vmem %s3, %s251
        %s253 = smul.u32 4, %s28
        %v255 = vld [vmem:[%s240] sm:$0xff]
        %v256 = vld [vmem:[%s240 + $0x8] sm:$0xff]
        %v257 = vld [vmem:[%s240 + $0x10] sm:$0xff]
        %v258 = vld [vmem:[%s240 + $0x18] sm:$0xff]
        %v259 = vld [vmem:[%s240 + $0x20] sm:$0xff]
        %v260 = vld [vmem:[%s240 + $0x28] sm:$0xff]
        %v261 = vld [vmem:[%s240 + $0x30] sm:$0xff]
        %v262 = vld [vmem:[%s240 + $0x38] sm:$0xff]
        %v263 = vpack.c.bf16 %v256, %v255
        %v264 = vpack.c.bf16 %v258, %v257
        %v265 = vpack.c.bf16 %v260, %v259
        %v266 = vpack.c.bf16 %v262, %v261
        %v267 = vld [vmem:[%s247] sm:$0xf]
        %v268 = vld [vmem:[%s247 + $0x4] sm:$0xf]
        %v271 = vunpack.c.l.b16 %v267
        %v272 = vunpack.c.l.b16 %v268
        %v273 = vpack.c.b16 %v272, %v271
        %vm275 = vcmask 130048
        %v277 = vsel %vm275, %v263, 0
        %v280 = vsel %vm275, %v264, 0
        %v283 = vsel %vm275, %v265, 0
        %v286 = vsel %vm275, %v266, 0
        %288 = vmatprep.subr.bf16.mxu0 0
        %289 = vmatpush1.bf16.msra.mxu0 0
        %290 = vmatprep.subr.bf16.mxu0 0
        %291 = vmatpush1.bf16.msra.mxu0 0
        %292 = vmatprep.subr.bf16.mxu0 0
        %293 = vmatpush1.bf16.msra.mxu0 0
        %294 = vmatprep.subr.bf16.mxu0 0
        %295 = vmatpush1.bf16.msra.mxu0 0
        %296 = vmatprep.subr.bf16.mxu0 0
        %297 = vmatpush1.bf16.msra.mxu0 0
        %298 = vmatprep.subr.bf16.mxu0 0
        %299 = vmatpush1.bf16.msra.mxu0 0
        %300 = vmatprep.subr.bf16.mxu0 0
        %301 = vmatpush1.bf16.msra.mxu0 0
        %302 = vmatprep.subr.bf16.mxu0 0
        %303 = vmatpush1.bf16.msra.mxu0 %v273
        %304 = vmatprep.subr.bf16.mxu0 0
        %305 = vmatpush2.bf16.msra.mxu0 0
        %306 = vmatprep.subr.bf16.mxu0 0
        %307 = vmatpush2.bf16.msra.mxu0 0
        %308 = vmatprep.subr.bf16.mxu0 0
        %309 = vmatpush2.bf16.msra.mxu0 0
        %310 = vmatprep.subr.bf16.mxu0 0
        %311 = vmatpush2.bf16.msra.mxu0 0
        %312 = vmatprep.subr.bf16.mxu0 0
        %313 = vmatpush2.bf16.msra.mxu0 0
        %314 = vmatprep.subr.bf16.mxu0 0
        %315 = vmatpush2.bf16.msra.mxu0 0
        %316 = vmatprep.subr.bf16.mxu0 0
        %317 = vmatpush2.bf16.msra.mxu0 0
        %318 = vmatprep.subr.bf16.mxu0 0
        %319 = vmatpush2.bf16.msra.mxu0 0
        %320 = vmatprep.mubr.bf16.mxu0 0
        %321 = vmatmul.mubr.bf16.gmra.mxu0 %v277
        %v322 = vpop.f32.mrf.mxu0
        %v323 = vadd.f32 0.0, %v322
        %v324 = vpop.f32.mrf.mxu0
        %v325 = vpop.f32.mrf.mxu0
        %v326 = vadd.f32 0.0, %v325
        %v327 = vpop.f32.mrf.mxu0
        %328 = vmatprep.mubr.bf16.mxu0 0
        %329 = vmatmul.mubr.bf16.gmra.mxu0 %v280
        %v330 = vpop.f32.mrf.mxu0
        %v331 = vadd.f32 0.0, %v330
        %v332 = vpop.f32.mrf.mxu0
        %v333 = vpop.f32.mrf.mxu0
        %v334 = vadd.f32 0.0, %v333
        %v335 = vpop.f32.mrf.mxu0
        %336 = vmatprep.mubr.bf16.mxu0 0
        %337 = vmatmul.mubr.bf16.gmra.mxu0 %v283
        %v338 = vpop.f32.mrf.mxu0
        %v339 = vadd.f32 0.0, %v338
        %v340 = vpop.f32.mrf.mxu0
        %v341 = vpop.f32.mrf.mxu0
        %v342 = vadd.f32 0.0, %v341
        %v343 = vpop.f32.mrf.mxu0
        %344 = vmatprep.mubr.bf16.mxu0 0
        %345 = vmatmul.mubr.bf16.gmra.mxu0 %v286
        %v346 = vpop.f32.mrf.mxu0
        %v347 = vadd.f32 0.0, %v346
        %v348 = vpop.f32.mrf.mxu0
        %v349 = vpop.f32.mrf.mxu0
        %v350 = vadd.f32 0.0, %v349
        %v351 = vpop.f32.mrf.mxu0
        %352 = vdwg.mxu0
        %v353 = vpack.c.bf16 %v326, %v323
        %v354 = vpack.c.bf16 %v334, %v331
        %v355 = vpack.c.bf16 %v342, %v339
        %v356 = vpack.c.bf16 %v350, %v347
        %v357 = vld [vmem:[%s252] sm:$0xf]
        %v358 = vld [vmem:[%s252 + $0x4] sm:$0xf]
        %v359 = vld [vmem:[%s252 + $0x8] sm:$0xf]
        %v363 = vunpack.c.l.b16 %v357
        %v364 = vunpack.c.l.b16 %v358
        %v365 = vunpack.c.l.b16 %v359
        %v366 = vpack.c.b16 %v364, %v363
        %v367 = vpack.c.b16 %v365, %v365
        %v369 = vsel %vm275, %v366, 0
        %v372 = vsel %vm275, %v367, 0
        %374 = vmatprep.subr.bf16.mxu0 0
        %375 = vmatpush1.bf16.msra.mxu0 0
        %376 = vmatprep.subr.bf16.mxu0 0
        %377 = vmatpush1.bf16.msra.mxu0 0
        %378 = vmatprep.subr.bf16.mxu0 0
        %379 = vmatpush1.bf16.msra.mxu0 0
        %380 = vmatprep.subr.bf16.mxu0 0
        %381 = vmatpush1.bf16.msra.mxu0 0
        %382 = vmatprep.subr.bf16.mxu0 0
        %383 = vmatpush1.bf16.msra.mxu0 0
        %384 = vmatprep.subr.bf16.mxu0 0
        %385 = vmatpush1.bf16.msra.mxu0 0
        %386 = vmatprep.subr.bf16.mxu0 0
        %387 = vmatpush1.bf16.msra.mxu0 0
        %388 = vmatprep.subr.bf16.mxu0 0
        %389 = vmatpush1.bf16.msra.mxu0 %v353
        %390 = vmatprep.subr.bf16.mxu0 0
        %391 = vmatpush2.bf16.msra.mxu0 0
        %392 = vmatprep.subr.bf16.mxu0 0
        %393 = vmatpush2.bf16.msra.mxu0 0
        %394 = vmatprep.subr.bf16.mxu0 0
        %395 = vmatpush2.bf16.msra.mxu0 0
        %396 = vmatprep.subr.bf16.mxu0 0
        %397 = vmatpush2.bf16.msra.mxu0 0
        %398 = vmatprep.subr.bf16.mxu0 0
        %399 = vmatpush2.bf16.msra.mxu0 0
        %400 = vmatprep.subr.bf16.mxu0 0
        %401 = vmatpush2.bf16.msra.mxu0 0
        %402 = vmatprep.subr.bf16.mxu0 0
        %403 = vmatpush2.bf16.msra.mxu0 0
        %404 = vmatprep.subr.bf16.mxu0 0
        %405 = vmatpush2.bf16.msra.mxu0 0
        %406 = vmatprep.mubr.bf16.mxu0 0
        %407 = vmatmul.mubr.bf16.gmra.mxu0 %v369
        %v408 = vpop.f32.mrf.mxu0
        %v409 = vadd.f32 0.0, %v408
        %v410 = vpop.f32.mrf.mxu0
        %v411 = vpop.f32.mrf.mxu0
        %v412 = vadd.f32 0.0, %v411
        %v413 = vpop.f32.mrf.mxu0
        %414 = vmatprep.mubr.bf16.mxu0 0
        %415 = vmatmul.mubr.bf16.gmra.mxu0 %v372
        %v416 = vpop.f32.mrf.mxu0
        %v417 = vadd.f32 0.0, %v416
        %v418 = vpop.f32.mrf.mxu0
        %v419 = vpop.f32.mrf.mxu0
        %v420 = vpop.f32.mrf.mxu0
        %421 = vdwg.mxu0
        %422 = vmatprep.subr.bf16.mxu0 0
        %423 = vmatpush1.bf16.msra.mxu0 0
        %424 = vmatprep.subr.bf16.mxu0 0
        %425 = vmatpush1.bf16.msra.mxu0 0
        %426 = vmatprep.subr.bf16.mxu0 0
        %427 = vmatpush1.bf16.msra.mxu0 0
        %428 = vmatprep.subr.bf16.mxu0 0
        %429 = vmatpush1.bf16.msra.mxu0 0
        %430 = vmatprep.subr.bf16.mxu0 0
        %431 = vmatpush1.bf16.msra.mxu0 0
        %432 = vmatprep.subr.bf16.mxu0 0
        %433 = vmatpush1.bf16.msra.mxu0 0
        %434 = vmatprep.subr.bf16.mxu0 0
        %435 = vmatpush1.bf16.msra.mxu0 0
        %436 = vmatprep.subr.bf16.mxu0 0
        %437 = vmatpush1.bf16.msra.mxu0 %v354
        %438 = vmatprep.subr.bf16.mxu0 0
        %439 = vmatpush2.bf16.msra.mxu0 0
        %440 = vmatprep.subr.bf16.mxu0 0
        %441 = vmatpush2.bf16.msra.mxu0 0
        %442 = vmatprep.subr.bf16.mxu0 0
        %443 = vmatpush2.bf16.msra.mxu0 0
        %444 = vmatprep.subr.bf16.mxu0 0
        %445 = vmatpush2.bf16.msra.mxu0 0
        %446 = vmatprep.subr.bf16.mxu0 0
        %447 = vmatpush2.bf16.msra.mxu0 0
        %448 = vmatprep.subr.bf16.mxu0 0
        %449 = vmatpush2.bf16.msra.mxu0 0
        %450 = vmatprep.subr.bf16.mxu0 0
        %451 = vmatpush2.bf16.msra.mxu0 0
        %452 = vmatprep.subr.bf16.mxu0 0
        %453 = vmatpush2.bf16.msra.mxu0 0
        %454 = vmatprep.mubr.bf16.mxu0 0
        %455 = vmatmul.mubr.bf16.gmra.mxu0 %v369
        %v456 = vpop.f32.mrf.mxu0
        %v457 = vadd.f32 0.0, %v456
        %v458 = vpop.f32.mrf.mxu0
        %v459 = vpop.f32.mrf.mxu0
        %v460 = vadd.f32 0.0, %v459
        %v461 = vpop.f32.mrf.mxu0
        %462 = vmatprep.mubr.bf16.mxu0 0
        %463 = vmatmul.mubr.bf16.gmra.mxu0 %v372
        %v464 = vpop.f32.mrf.mxu0
        %v465 = vadd.f32 0.0, %v464
        %v466 = vpop.f32.mrf.mxu0
        %v467 = vpop.f32.mrf.mxu0
        %v468 = vpop.f32.mrf.mxu0
        %469 = vdwg.mxu0
        %470 = vmatprep.subr.bf16.mxu0 0
        %471 = vmatpush1.bf16.msra.mxu0 0
        %472 = vmatprep.subr.bf16.mxu0 0
        %473 = vmatpush1.bf16.msra.mxu0 0
        %474 = vmatprep.subr.bf16.mxu0 0
        %475 = vmatpush1.bf16.msra.mxu0 0
        %476 = vmatprep.subr.bf16.mxu0 0
        %477 = vmatpush1.bf16.msra.mxu0 0
        %478 = vmatprep.subr.bf16.mxu0 0
        %479 = vmatpush1.bf16.msra.mxu0 0
        %480 = vmatprep.subr.bf16.mxu0 0
        %481 = vmatpush1.bf16.msra.mxu0 0
        %482 = vmatprep.subr.bf16.mxu0 0
        %483 = vmatpush1.bf16.msra.mxu0 0
        %484 = vmatprep.subr.bf16.mxu0 0
        %485 = vmatpush1.bf16.msra.mxu0 %v355
        %486 = vmatprep.subr.bf16.mxu0 0
        %487 = vmatpush2.bf16.msra.mxu0 0
        %488 = vmatprep.subr.bf16.mxu0 0
        %489 = vmatpush2.bf16.msra.mxu0 0
        %490 = vmatprep.subr.bf16.mxu0 0
        %491 = vmatpush2.bf16.msra.mxu0 0
        %492 = vmatprep.subr.bf16.mxu0 0
        %493 = vmatpush2.bf16.msra.mxu0 0
        %494 = vmatprep.subr.bf16.mxu0 0
        %495 = vmatpush2.bf16.msra.mxu0 0
        %496 = vmatprep.subr.bf16.mxu0 0
        %497 = vmatpush2.bf16.msra.mxu0 0
        %498 = vmatprep.subr.bf16.mxu0 0
        %499 = vmatpush2.bf16.msra.mxu0 0
        %500 = vmatprep.subr.bf16.mxu0 0
        %501 = vmatpush2.bf16.msra.mxu0 0
        %502 = vmatprep.mubr.bf16.mxu0 0
        %503 = vmatmul.mubr.bf16.gmra.mxu0 %v369
        %v504 = vpop.f32.mrf.mxu0
        %v505 = vadd.f32 0.0, %v504
        %v506 = vpop.f32.mrf.mxu0
        %v507 = vpop.f32.mrf.mxu0
        %v508 = vadd.f32 0.0, %v507
        %v509 = vpop.f32.mrf.mxu0
        %510 = vmatprep.mubr.bf16.mxu0 0
        %511 = vmatmul.mubr.bf16.gmra.mxu0 %v372
        %v512 = vpop.f32.mrf.mxu0
        %v513 = vadd.f32 0.0, %v512
        %v514 = vpop.f32.mrf.mxu0
        %v515 = vpop.f32.mrf.mxu0
        %v516 = vpop.f32.mrf.mxu0
        %517 = vdwg.mxu0
        %518 = vmatprep.subr.bf16.mxu0 0
        %519 = vmatpush1.bf16.msra.mxu0 0
        %520 = vmatprep.subr.bf16.mxu0 0
        %521 = vmatpush1.bf16.msra.mxu0 0
        %522 = vmatprep.subr.bf16.mxu0 0
        %523 = vmatpush1.bf16.msra.mxu0 0
        %524 = vmatprep.subr.bf16.mxu0 0
        %525 = vmatpush1.bf16.msra.mxu0 0
        %526 = vmatprep.subr.bf16.mxu0 0
        %527 = vmatpush1.bf16.msra.mxu0 0
        %528 = vmatprep.subr.bf16.mxu0 0
        %529 = vmatpush1.bf16.msra.mxu0 0
        %530 = vmatprep.subr.bf16.mxu0 0
        %531 = vmatpush1.bf16.msra.mxu0 0
        %532 = vmatprep.subr.bf16.mxu0 0
        %533 = vmatpush1.bf16.msra.mxu0 %v356
        %534 = vmatprep.subr.bf16.mxu0 0
        %535 = vmatpush2.bf16.msra.mxu0 0
        %536 = vmatprep.subr.bf16.mxu0 0
        %537 = vmatpush2.bf16.msra.mxu0 0
        %538 = vmatprep.subr.bf16.mxu0 0
        %539 = vmatpush2.bf16.msra.mxu0 0
        %540 = vmatprep.subr.bf16.mxu0 0
        %541 = vmatpush2.bf16.msra.mxu0 0
        %542 = vmatprep.subr.bf16.mxu0 0
        %543 = vmatpush2.bf16.msra.mxu0 0
        %544 = vmatprep.subr.bf16.mxu0 0
        %545 = vmatpush2.bf16.msra.mxu0 0
        %546 = vmatprep.subr.bf16.mxu0 0
        %547 = vmatpush2.bf16.msra.mxu0 0
        %548 = vmatprep.subr.bf16.mxu0 0
        %549 = vmatpush2.bf16.msra.mxu0 0
        %550 = vmatprep.mubr.bf16.mxu0 0
        %551 = vmatmul.mubr.bf16.gmra.mxu0 %v369
        %v552 = vpop.f32.mrf.mxu0
        %v553 = vadd.f32 0.0, %v552
        %v554 = vpop.f32.mrf.mxu0
        %v555 = vpop.f32.mrf.mxu0
        %v556 = vadd.f32 0.0, %v555
        %v557 = vpop.f32.mrf.mxu0
        %558 = vmatprep.mubr.bf16.mxu0 0
        %559 = vmatmul.mubr.bf16.gmra.mxu0 %v372
        %v560 = vpop.f32.mrf.mxu0
        %v561 = vadd.f32 0.0, %v560
        %v562 = vpop.f32.mrf.mxu0
        %v563 = vpop.f32.mrf.mxu0
        %v564 = vpop.f32.mrf.mxu0
        %565 = vdwg.mxu0
        %v566 = vlaneseq
        %v567 = vand.u32 %v566, 127
        %vm568 = vcmp.ge.s32.totalorder %v567, 0
        %vm569 = vcmp.lt.s32.totalorder %v567, 8
        %vm570 = vmand %vm568, %vm569
        %v571 = vsel %vm570, 1, 0
        %vm572 = vcmp.eq.s32.totalorder %v571, 1
        %v573 = vsel %vm572, %v409, 0.0
        %v574 = vsel %vm572, %v457, 0.0
        %v575 = vsel %vm572, %v505, 0.0
        %v576 = vsel %vm572, %v553, 0.0
        %v577 = vadd.f32 %v573, 0.0
        %v578 = vadd.f32 %v574, 0.0
        %v579 = vadd.f32 %v575, 0.0
        %v580 = vadd.f32 %v576, 0.0
        %vm581 = vcmp.ge.s32.totalorder %v567, 8
        %vm582 = vcmp.lt.s32.totalorder %v567, 16
        %vm583 = vmand %vm581, %vm582
        %v584 = vsel %vm583, 1, 0
        %vm585 = vcmp.eq.s32.totalorder %v584, 1
        %v586 = vsel %vm585, %v412, 0.0
        %v587 = vsel %vm585, %v460, 0.0
        %v588 = vsel %vm585, %v508, 0.0
        %v589 = vsel %vm585, %v556, 0.0
        %v590 = vadd.f32 %v577, %v586
        %v591 = vadd.f32 %v578, %v587
        %v592 = vadd.f32 %v579, %v588
        %v593 = vadd.f32 %v580, %v589
        %vm594 = vcmp.ge.s32.totalorder %v567, 16
        %vm595 = vcmp.lt.s32.totalorder %v567, 24
        %vm596 = vmand %vm594, %vm595
        %v597 = vsel %vm596, 1, 0
        %vm598 = vcmp.eq.s32.totalorder %v597, 1
        %v599 = vsel %vm598, %v417, 0.0
        %v600 = vsel %vm598, %v465, 0.0
        %v601 = vsel %vm598, %v513, 0.0
        %v602 = vsel %vm598, %v561, 0.0
        %v603 = vadd.f32 %v590, %v599
        %v604 = vadd.f32 %v591, %v600
        %v605 = vadd.f32 %v592, %v601
        %v606 = vadd.f32 %v593, %v602
        %vm607 = vcmask 195584
        %608 = vst.msk [vmem:[%s230] sm:$0xff] %vm607, %v603
        %609 = vst.msk [vmem:[%s230 + $0x8] sm:$0xff] %vm607, %v604
        %610 = vst.msk [vmem:[%s230 + $0x10] sm:$0xff] %vm607, %v605
        %611 = vst.msk [vmem:[%s230 + $0x18] sm:$0xff] %vm607, %v606
        %s612 = sand.u32 %s128, 1
        %s613 = scalar_lea.sflag [#allocation5], %s612
        %s614 = sand.u32 %s128, 1
        %s615 = smul.addr %s614, 32
        %s616 = scalar_lea.vmem [#allocation4], %s615
        // Predicated region
        $region33: #{tpu_custom_call.1} parent=31 // pred_check
          %p617 = pneg %p138
        $region34: #{tpu_custom_call.1} parent=31 // pred_check_branch
          %619 = sbr.rel (%p617) target = $region36
        $region35: #{tpu_custom_call.1} parent=31 // pred_region
          %s620 = smul.u32 4, %s28
          %s622 = ssub.s32 512, 512
          %623 = vsyncadd %s613, %s622
          %s624 = smul.addr %s29, 4
          %s625 = sadd.s32 %s620, %s624
          %s626 = smul.addr %s625, 128
          %s627 = scalar_lea.hbm %s4, %s626
          %s628 = sshll.u32 %s616, 4
          %s629 = int_to_ptr.vmem [resolvable:$true] %s628
          %634 = dma.vmem_to_hbm [thread:$0]  %s629, 512, %s627, %s613, 128, 128, 8
        $region36: #{tpu_custom_call.1} parent=31 // pred_fallthru
          _
      $region32: #{tpu_custom_call.1} parent=5 // pred_fallthru
        _
      %p635 = scmp.le.s32.totalorder 2, %s19
      // Predicated region
      $region37: #{tpu_custom_call.1} parent=5 // pred_check
        %p636 = pneg %p635
      $region38: #{tpu_custom_call.1} parent=5 // pred_check_branch
        %638 = sbr.rel (%p636) target = $region40
      $region39: #{tpu_custom_call.1} parent=5 // pred_region
        %s639 = ssub.s32 %s19, 2
        // Predicated region
        $region41: #{tpu_custom_call.1} parent=39 // pred_check
          %p640 = pneg %p144
        $region42: #{tpu_custom_call.1} parent=39 // pred_check_branch
          %642 = sbr.rel (%p640) target = $region44
        $region43: #{tpu_custom_call.1} parent=39 // pred_region
          %s643 = sand.u32 %s129, 1
          %s644 = scalar_lea.sflag [#allocation5], %s643
          %s645 = sand.u32 %s129, 1
          %s646 = smul.addr %s645, 32
          %s647 = scalar_lea.vmem [#allocation4], %s646
          %648 = dma.done %s644, 512
        $region44: #{tpu_custom_call.1} parent=39 // pred_fallthru
          _
      $region40: #{tpu_custom_call.1} parent=5 // pred_fallthru
        _
    $region6: #{tpu_custom_call.1} parent=1 // loop_footer
      %s23 = sadd.s32 1, %s19
    $region7: #{tpu_custom_call.1} parent=1 // loop_footer_branch
      %18 = sbr.rel target = $region3
    $region8: #{tpu_custom_call.1} parent=1 // loop_exit
      _
    %649 = vsyncpa [#allocation5], 1
    %s650 = scalar_lea.sflag [#allocation5], 1
    %651 = vsyncpa %s650, 1

</llo_original>
